<compile_context>
chip_gen: v6e
topology: v6e:2x2x1
jax: 0.10.0
libtpu: 0.0.40
codegen_flags: <defaults>
</compile_context>

<pallas_src>
import functools

import jax
import jax.numpy as jnp
from jax.experimental import pallas as pl
from jax.experimental.pallas import tpu as pltpu


def generate_mask(shape: int, traj_length: int, n_act_t: int) -> jnp.ndarray:
    """Reference mask (only used for the correctness check in __main__)."""
    col = jnp.arange(traj_length)
    mask = (col[None, :] < n_act_t).astype(jnp.float32)     # (1, T)
    return jnp.broadcast_to(mask, (shape, traj_length))     # (S, T)


def _armask_kernel(n_act_ref, x_ref, o_ref, *, seq_len: int):
    # x_ref / o_ref: (row_tile, col_tile) VMEM tiles; n_act_ref: (1,) int32 SMEM.
    # Row-invariant mask: build it once per (1, col_tile) strip and let the
    # multiply broadcast over sublanes (cheap), instead of a full-block iota.
    col_tile = x_ref.shape[1]
    col = jax.lax.broadcasted_iota(jnp.int32, (1, col_tile), 1)
    col = col + pl.program_id(1) * col_tile          # global flattened column
    t = col % seq_len                                # time index of each column
    mask = (t < n_act_ref[0]).astype(o_ref.dtype)    # (1, col_tile)
    # Multiply (not where) => bit-identical to PyTorch `x * mask` incl. NaN/Inf.
    o_ref[...] = x_ref[...] * mask


def armask_forward(x: jnp.ndarray, n_act_t: int, traj_length: int) -> jnp.ndarray:
    """x: (B, C, S, L); multiplies by the AR mask (ones on first n_act_t steps)."""
    B, C, S, L = x.shape
    assert L <= traj_length, "sequence length exceeds mask traj_length"

    R = B * C
    W = S * L
    x2 = x.reshape(R, W)                             # lane-dense 2-D slab

    itemsize = x.dtype.itemsize
    row_mult = max(8, 32 // itemsize)                # f32: 8, bf16: 16, int8: 32
    col_mult = 128

    # Block budget: ~8 MiB per buffer; 2 in + 2 out double-buffered = 32 MiB,
    # which stays under the 48 MiB limit we set (v7x has 64 MiB VMEM per TC).
    # For mid-size arrays cap at half the array so the "parallel" grid has
    # >= 2 tiles (both v7x TensorCores run); tiny arrays get a single block.
    TARGET_BLOCK_BYTES = 8 * 1024 * 1024
    MIN_BLOCK_BYTES = 512 * 1024
    total_bytes = R * W * itemsize
    budget = min(TARGET_BLOCK_BYTES, max(MIN_BLOCK_BYTES, total_bytes // 2))

    if W * row_mult * itemsize <= budget:
        # Full-width rows fit: keep columns whole, tile over rows.
        col_tile = W
        row_tile = (budget // (W * itemsize)) // row_mult * row_mult
        row_tile = max(row_mult, row_tile)
        if row_tile >= R:
            row_tile = R                             # full dim -> always legal
    else:
        # Very wide slab: minimal row strip, tile over columns to bound VMEM.
        row_tile = min(row_mult, R)
        col_tile = (budget // (row_tile * itemsize)) // col_mult * col_mult
        col_tile = max(col_mult, col_tile)
        if col_tile >= W:
            col_tile = W

    n_row_tiles = pl.cdiv(R, row_tile)               # ragged last block is OK:
    n_col_tiles = pl.cdiv(W, col_tile)               # OOB stores are dropped

    kernel = functools.partial(_armask_kernel, seq_len=L)
    n_act = jnp.asarray([n_act_t], dtype=jnp.int32)

    out2 = pl.pallas_call(
        kernel,
        out_shape=jax.ShapeDtypeStruct((R, W), x.dtype),
        grid_spec=pltpu.PrefetchScalarGridSpec(
            num_scalar_prefetch=1,
            grid=(n_row_tiles, n_col_tiles),
            in_specs=[pl.BlockSpec((row_tile, col_tile),
                                   lambda i, j, n_act_ref: (i, j))],
            out_specs=pl.BlockSpec((row_tile, col_tile),
                                   lambda i, j, n_act_ref: (i, j)),
        ),
        compiler_params=pltpu.CompilerParams(
            dimension_semantics=("parallel", "parallel"),
            vmem_limit_bytes=48 * 1024 * 1024,       # <= ~48 MiB for v7x's 64 MiB VMEM
        ),
        cost_estimate=pl.CostEstimate(
            flops=R * W,                             # one multiply per element
            transcendentals=0,
            bytes_accessed=2 * R * W * itemsize,     # 1 read + 1 write pass
        ),
    )(n_act, x2)

    return out2.reshape(B, C, S, L)


def _reference(x, n_act_t, traj_length):
    S, L = x.shape[-2], x.shape[-1]
    mask = generate_mask(S, traj_length, n_act_t)
    return x * mask[:, :L][None, None, :, :]


if __name__ == "__main__":
    key = jax.random.PRNGKey(0)
    k0, k1, k2 = jax.random.split(key, 3)

    # Case 1: module-consistent small shape (single block).
    S, T, n_act_t = 16, 20, 5
    B, C, L = 2, 4, 16
    x = jax.random.normal(k0, (B, C, S, L), dtype=jnp.float32)
    out = jax.block_until_ready(armask_forward(x, n_act_t, T))
    assert out.shape == x.shape
    assert jnp.allclose(out, _reference(x, n_act_t, T)), "case 1 mismatch"

    # Case 2: row count not a multiple of the tile -> ragged final row block.
    x2 = jax.random.normal(k1, (3, 7, 64, 128), dtype=jnp.float32)
    out2 = jax.block_until_ready(armask_forward(x2, 40, 128))
    assert jnp.allclose(out2, _reference(x2, 40, 128)), "case 2 mismatch"

    # Case 3: wide slab -> column-tiled grid (exercises the iota offset path).
    x3 = jax.random.normal(k2, (2, 4, 256, 128), dtype=jnp.float32)
    out3 = jax.block_until_ready(armask_forward(x3, 100, 128))
    assert jnp.allclose(out3, _reference(x3, 100, 128)), "case 3 mismatch"

    print("KERNEL_OK")
</pallas_src>

<mosaic_0001>
module attributes {stable_mosaic.version = 11 : i64} {
  func.func @_armask_kernel(%arg0: i32, %arg1: i32, %arg2: memref<1xi32, #tpu.memory_space<smem>>, %arg3: memref<8x256xf32, #tpu.memory_space<vmem>>, %arg4: memref<8x256xf32, #tpu.memory_space<vmem>>) attributes {dimension_semantics = [#tpu.dimension_semantics<parallel>, #tpu.dimension_semantics<parallel>], iteration_bounds = array<i64: 1, 1>, scalar_prefetch = 1 : i64, scratch_operands = 0 : i64, tpu.core_type = #tpu.core_type<tc>, window_params = [{transform_indices = @transform_0, window_bounds = array<i64: 8, 256>}, {transform_indices = @transform_1, window_bounds = array<i64: 8, 256>}]} {
    %0 = tpu.iota {dimensions = array<i32: 1>} : vector<1x256xi32>
    %c256_i32 = arith.constant 256 : i32
    %1 = arith.muli %arg1, %c256_i32 : i32
    %2 = vector.broadcast %1 : i32 to vector<1x256xi32>
    %3 = arith.addi %0, %2 : vector<1x256xi32>
    %c16_i32 = arith.constant 16 : i32
    %c0_i32 = arith.constant 0 : i32
    %4 = arith.cmpi eq, %c16_i32, %c0_i32 : i32
    %c1_i32 = arith.constant 1 : i32
    %5 = arith.select %4, %c1_i32, %c16_i32 : i32
    %6 = vector.broadcast %5 : i32 to vector<1x256xi32>
    %7 = arith.remsi %3, %6 : vector<1x256xi32>
    %c0_i32_0 = arith.constant 0 : i32
    %8 = vector.broadcast %c0_i32_0 : i32 to vector<1x256xi32>
    %9 = arith.cmpi ne, %7, %8 : vector<1x256xi32>
    %c0_i32_1 = arith.constant 0 : i32
    %10 = vector.broadcast %c0_i32_1 : i32 to vector<1x256xi32>
    %11 = arith.cmpi slt, %7, %10 : vector<1x256xi32>
    %c0_i32_2 = arith.constant 0 : i32
    %12 = arith.cmpi slt, %5, %c0_i32_2 : i32
    %13 = vector.broadcast %12 : i1 to vector<1x256xi1>
    %14 = vector.broadcast %13 : vector<1x256xi1> to vector<1x256xi1>
    %15 = arith.xori %11, %14 : vector<1x256xi1>
    %16 = arith.andi %15, %9 : vector<1x256xi1>
    %17 = vector.broadcast %5 : i32 to vector<1x256xi32>
    %18 = arith.addi %7, %17 : vector<1x256xi32>
    %19 = arith.select %16, %18, %7 : vector<1x256xi1>, vector<1x256xi32>
    %c0 = arith.constant 0 : index
    %20 = memref.load %arg2[%c0] : memref<1xi32, #tpu.memory_space<smem>>
    %21 = vector.broadcast %20 : i32 to vector<1x256xi32>
    %22 = arith.cmpi slt, %19, %21 : vector<1x256xi32>
    %23 = arith.extui %22 : vector<1x256xi1> to vector<1x256xi32>
    %24 = arith.sitofp %23 : vector<1x256xi32> to vector<1x256xf32>
    %c0_3 = arith.constant 0 : index
    %c0_4 = arith.constant 0 : index
    %25 = vector.load %arg3[%c0_3, %c0_4] : memref<8x256xf32, #tpu.memory_space<vmem>>, vector<8x256xf32>
    %26 = vector.broadcast %24 : vector<1x256xf32> to vector<8x256xf32>
    %27 = arith.mulf %25, %26 : vector<8x256xf32>
    %c0_5 = arith.constant 0 : index
    %c0_6 = arith.constant 0 : index
    %28 = vector.load %arg4[%c0_5, %c0_6] : memref<8x256xf32, #tpu.memory_space<vmem>>, vector<8x256xf32>
    tpu.vector_store %arg4[%c0_5, %c0_6], %27 {strides = array<i32>} : memref<8x256xf32, #tpu.memory_space<vmem>>, vector<8x256xf32>,
    return
  }
  func.func @transform_0(%arg0: i32, %arg1: i32, %arg2: memref<1xi32, #tpu.memory_space<smem>>) -> (i32, i32) {
    %c0_i32 = arith.constant 0 : i32
    return %arg0, %arg1 : i32, i32
  }
  func.func @transform_1(%arg0: i32, %arg1: i32, %arg2: memref<1xi32, #tpu.memory_space<smem>>) -> (i32, i32) {
    %c0_i32 = arith.constant 0 : i32
    return %arg0, %arg1 : i32, i32
  }
}

</mosaic_0001>

<llo_original>
// kernel: tpu_custom_call.1
$region0: #{tpu_custom_call.1}
  #allocation0 [shape = 'u32[]', space=smem, size = 0x4, offset = 0x4, fixed_abs, tag = 'smem constant byte address 0x4 - core index']
  #allocation1 [shape = 'u32[144,128]{1,0:T(1,128)}', space=vmem, size = 0x12000, scoped, tag = 'internal scratch']
  #allocation2 [shape = 's32[1]{0}', space=sflag, size = 0x4, scoped, tag = 'scoped memory for tpu_custom_call.1']
  #allocation3 [shape = 's32[1]{0:T(128)S(6)}', space=smem, size = 0x200, scoped, tag = 'prefetched SMEM operand 0']
  %s0 = inlined_call_operand.<no memory space> [shape: s32[1], index: 0, kind: input, shape index: {}]
  %s1 = inlined_call_operand.hbm [shape: f32[8,256], index: 1, kind: input, shape index: {}]
  %s2 = inlined_call_operand.hbm [shape: f32[8,256], index: 2, kind: output, shape index: {}]
  %s3 = sld [smem:[#allocation0]]
  $region18: #{tpu_custom_call.1} parent=0
    _
  %s5 = ssub.s32 1, %s3
  %s6 = scalar_select 0, %s5, %s3
  %7 = sst [smem:[#allocation3]] %s0
  $region1: #{tpu_custom_call.1} parent=0
    #allocation4 [shape = 'u8[8192]{0}', space=vmem, size = 0x2000, scoped, tag = 'input window, operand 1, single buffered']
    #allocation5 [shape = 's32[1]{0}', space=sflag, size = 0x4, scoped, tag = 'scoped memory for tpu_custom_call.1']
    #allocation6 [shape = 's32[1]{0}', space=sflag, size = 0x4, scoped, tag = 'scoped memory for tpu_custom_call.1']
    #allocation7 [shape = 'u8[8192]{0}', space=vmem, size = 0x2000, scoped, tag = 'output window, operand 0, single buffered']
    %8 = vsyncpa [#allocation5], 0
    %9 = vsyncpa [#allocation6], 0
    // Predicated region
    $region2: #{tpu_custom_call.1} parent=1 // pred_check
      _
    $region3: #{tpu_custom_call.1} parent=1 // pred_check_branch
      %11 = sbr.rel (0) target = $region5
    $region4: #{tpu_custom_call.1} parent=1 // pred_region
      %s13 = ssub.s32 256, 256
      %14 = vsyncadd [#allocation5], %s13
      %s16 = sshll.u32 [#allocation4], 4
      %s17 = int_to_ptr.vmem [resolvable:$true] %s16
      %19 = dma.hbm_to_vmem [thread:$0]  %s1, 256, %s17, [#allocation5]
    $region5: #{tpu_custom_call.1} parent=1 // pred_fallthru
      _
    // Predicated region
    $region6: #{tpu_custom_call.1} parent=1 // pred_check
      _
    $region7: #{tpu_custom_call.1} parent=1 // pred_check_branch
      %21 = sbr.rel (0) target = $region9
    $region8: #{tpu_custom_call.1} parent=1 // pred_region
      %22 = dma.done [#allocation5], 256
    $region9: #{tpu_custom_call.1} parent=1 // pred_fallthru
      _
    %v23 = vlaneseq
    %v24 = vand.u32 %v23, 127
    %v25 = vadd.s32 %v24, 128
    %s26 = smul.u32 0, 256
    %v27 = vstv %s26
    %v28 = vadd.s32 %v24, %v27
    %v29 = vadd.s32 %v25, %v27
    %vm30 = vcmp.lt.s32.totalorder %v28, 0
    %v31 = vsub.s32 0, %v28
    %v32 = vsel %vm30, %v31, %v28
    %v33 = vshrl.u32 %v32, 4
    %v34 = vand.u32 %v32, 15
    %v35 = vsub.s32 0, %v34
    %v36 = vsel %vm30, %v35, %v34
    %vm37 = vcmp.lt.s32.totalorder %v29, 0
    %v38 = vsub.s32 0, %v29
    %v39 = vsel %vm37, %v38, %v29
    %v40 = vshrl.u32 %v39, 4
    %v41 = vand.u32 %v39, 15
    %v42 = vsub.s32 0, %v41
    %v43 = vsel %vm37, %v42, %v41
    %vm44 = vcmp.ne.s32.totalorder %v36, 0
    %vm45 = vcmp.ne.s32.totalorder %v43, 0
    %vm46 = vcmp.lt.s32.totalorder %v36, 0
    %vm47 = vcmp.lt.s32.totalorder %v43, 0
    %vm48 = vmand %vm46, %vm44
    %vm49 = vmand %vm47, %vm45
    %v50 = vadd.s32 %v36, 16
    %v51 = vadd.s32 %v43, 16
    %v52 = vsel %vm48, %v50, %v36
    %v53 = vsel %vm49, %v51, %v43
    %s54 = sld [smem:[#allocation3]]
    %v55 = vstv %s54
    %vm56 = vcmp.lt.s32.totalorder %v52, %v55
    %vm57 = vcmp.lt.s32.totalorder %v53, %v55
    %v58 = vsel %vm56, 1, 0
    %v59 = vsel %vm57, 1, 0
    %v60 = vcvt.s32.f32 %v58
    %v61 = vcvt.s32.f32 %v59
    %v62 = vld [vmem:[#allocation4] sm:$0xff]
    %v63 = vld [vmem:[#allocation4 + $0x8] sm:$0xff]
    %v64 = vmul.f32 %v62, %v60
    %v65 = vmul.f32 %v63, %v61
    %66 = vst [vmem:[#allocation7] sm:$0xff] %v64
    %67 = vst [vmem:[#allocation7 + $0x8] sm:$0xff] %v65
    // Predicated region
    $region10: #{tpu_custom_call.1} parent=1 // pred_check
      _
    $region11: #{tpu_custom_call.1} parent=1 // pred_check_branch
      %69 = sbr.rel (0) target = $region13
    $region12: #{tpu_custom_call.1} parent=1 // pred_region
      %s71 = ssub.s32 256, 256
      %72 = vsyncadd [#allocation6], %s71
      %s74 = sshll.u32 [#allocation7], 4
      %s75 = int_to_ptr.vmem [resolvable:$true] %s74
      %77 = dma.vmem_to_hbm [thread:$0]  %s75, 256, %s2, [#allocation6]
    $region13: #{tpu_custom_call.1} parent=1 // pred_fallthru
      _
    // Predicated region
    $region14: #{tpu_custom_call.1} parent=1 // pred_check
      _
    $region15: #{tpu_custom_call.1} parent=1 // pred_check_branch
      %79 = sbr.rel (0) target = $region17
    $region16: #{tpu_custom_call.1} parent=1 // pred_region
      %80 = dma.done [#allocation6], 256
    $region17: #{tpu_custom_call.1} parent=1 // pred_fallthru
      _
    %81 = vsyncpa [#allocation5], 1
    %82 = vsyncpa [#allocation6], 1

</llo_original>
